<compile_context>
chip_gen: v7x
topology: tpu7x:2x2x1
jax: 0.10.0
libtpu: 0.0.40
codegen_flags: <defaults>
</compile_context>

<pallas_src>
import functools

import jax
import jax.numpy as jnp
import numpy as np
from jax.experimental import pallas as pl
from jax.experimental.pallas import tpu as pltpu


# --------------------------------------------------------------------------
# Shared helpers
# --------------------------------------------------------------------------
def _ceil_to(x: int, m: int) -> int:
    return -(-x // m) * m


def _conv_sigmoid(mean, w_ref, C: int, K: int):
    """Conv1d(k, pad=k//2, no bias) over channels + sigmoid on a (C, 1) f32 column.

    Uses masked sublane rolls (XLU) so the conv stays on-chip and vectorized."""
    pad = K // 2
    ch = jax.lax.broadcasted_iota(jnp.int32, (C, 1), 0)
    conv = jnp.zeros((C, 1), jnp.float32)
    for j in range(K):                                    # K is static & tiny
        shift = (pad - j) % C
        rolled = pltpu.roll(mean, shift=shift, axis=0) if shift else mean
        src = ch + (j - pad)                              # intended source channel
        valid = (src >= 0) & (src < C)                    # Conv1d zero padding
        conv = conv + w_ref[j] * jnp.where(valid, rolled, 0.0)
    return jax.nn.sigmoid(conv)


# --------------------------------------------------------------------------
# Kernels
# --------------------------------------------------------------------------
def _fused_kernel(w_ref, x_ref, o_ref, *, C, HW, K):
    """Grid (B,).  Whole (C, HW) slab resident in VMEM: pool, conv, sigmoid,
    scale, write — x is read from HBM exactly once."""
    x = x_ref[...]                                                     # (C, HW)
    mean = jnp.sum(x.astype(jnp.float32), axis=-1, keepdims=True) * (1.0 / HW)
    attn = _conv_sigmoid(mean, w_ref, C, K)                            # (C, 1)
    o_ref[...] = x * attn.astype(x.dtype)                              # lane-broadcast


def _pool_conv_kernel(w_ref, x_ref, attn_ref, *, C, HW, K, tail):
    """Fallback phase 1.  Grid (B, num_hw_tiles).  Accumulates spatial sums into
    attn_ref (C, 1); on the last tile only the `tail` valid columns are read
    (no HBM-side padding), then mean -> conv -> sigmoid."""
    t = pl.program_id(1)
    nt = pl.num_programs(1)

    @pl.when(t == 0)
    def _():
        attn_ref[...] = jnp.zeros_like(attn_ref)

    if tail == 0:
        # HW divides the tile size: every block is full.
        attn_ref[...] += jnp.sum(x_ref[...].astype(jnp.float32), axis=-1,
                                 keepdims=True)
    else:
        @pl.when(t < nt - 1)
        def _():
            attn_ref[...] += jnp.sum(x_ref[...].astype(jnp.float32), axis=-1,
                                     keepdims=True)

        @pl.when(t == nt - 1)
        def _():
            # Last (partial) block: only the first `tail` lanes were DMA'd from
            # HBM; read just those (static slice) so stale VMEM never pollutes
            # the sum.
            attn_ref[...] += jnp.sum(x_ref[:, :tail].astype(jnp.float32),
                                     axis=-1, keepdims=True)

    @pl.when(t == nt - 1)
    def _():
        mean = attn_ref[...] * (1.0 / HW)                   # true HW in the mean
        attn_ref[...] = _conv_sigmoid(mean, w_ref, C, K)


def _scale_kernel(attn_ref, x_ref, o_ref):
    """Fallback phase 2.  Grid (B, num_hw_tiles), fully parallel, lane-dense
    broadcast multiply in native dtype.  Out-of-bounds columns of the last
    partial block are dropped by Pallas on write-back."""
    o_ref[...] = x_ref[...] * attn_ref[...].astype(x_ref.dtype)


# --------------------------------------------------------------------------
# Wrapper
# --------------------------------------------------------------------------
def eca_kernel_size(in_channels: int, gamma: float = 2.0, b: float = 1.0) -> int:
    t = int(abs((np.log2(in_channels) + b) / gamma))
    return t if t % 2 else t + 1


_FUSED_VMEM_GATE = 24 << 20   # total for 4 (C, HW) buffers (in+out, double-buffered)
_P1_BUF_BYTES = 8 << 20       # pooling pass: 2 buffers of (C, T1)
_P2_BUF_BYTES = 6 << 20       # scale pass:   4 buffers of (C, T2)


def _sublane_pad(C: int, itemsize: int) -> int:
    # Sub-32-bit dtypes pack along sublanes -> bigger minimum sublane tile.
    sub = 8 * max(1, 4 // max(1, itemsize))
    return _ceil_to(C, sub)


def _padded_slab_bytes(C: int, HW: int, itemsize: int) -> int:
    return _sublane_pad(C, itemsize) * _ceil_to(HW, 128) * itemsize


def _lane_tile(C: int, HW: int, itemsize: int, per_buffer_bytes: int) -> int:
    """Largest multiple-of-128 HW tile such that one (C, T) buffer fits the budget."""
    hw128 = _ceil_to(HW, 128)
    c_pad = _sublane_pad(C, itemsize)
    t_max = max(128, per_buffer_bytes // (c_pad * itemsize) // 128 * 128)
    return min(hw128, t_max)


def eca_forward(x_nchw, conv_weight, *, force_two_pass: bool = False):
    """x_nchw: (B, C, H, W); conv_weight: (k,) Conv1d(1,1,k,bias=False) weights."""
    B, C, H, W = x_nchw.shape
    HW = H * W
    K = int(conv_weight.shape[0])
    itemsize = jnp.dtype(x_nchw.dtype).itemsize
    conv_weight = conv_weight.astype(jnp.float32)

    x_flat = x_nchw.reshape(B, C, HW)       # view-only reshape, no HBM copy of data
    slab = _padded_slab_bytes(C, HW, itemsize)

    # ---------------- Fused single-pass path (typical ECA shapes) ----------------
    if not force_two_pass and 4 * slab <= _FUSED_VMEM_GATE:
        out_flat = pl.pallas_call(
            functools.partial(_fused_kernel, C=C, HW=HW, K=K),
            out_shape=jax.ShapeDtypeStruct((B, C, HW), x_nchw.dtype),
            grid_spec=pltpu.PrefetchScalarGridSpec(
                num_scalar_prefetch=0,
                grid=(B,),
                in_specs=[
                    pl.BlockSpec(memory_space=pltpu.MemorySpace.SMEM),       # weights
                    pl.BlockSpec((pl.Squeezed(), C, HW), lambda b: (b, 0, 0)),
                ],
                out_specs=pl.BlockSpec((pl.Squeezed(), C, HW), lambda b: (b, 0, 0)),
            ),
            compiler_params=pltpu.CompilerParams(
                dimension_semantics=("parallel",),        # megacore shards batches
                vmem_limit_bytes=48 << 20),
            cost_estimate=pl.CostEstimate(
                flops=B * C * (2 * HW + 2 * K),
                transcendentals=B * C,
                bytes_accessed=2 * B * C * HW * itemsize),
        )(conv_weight, x_flat)
        return out_flat.reshape(B, C, H, W)

    # ---------------- Two-pass fallback (slab too big for VMEM) ----------------
    # Phase 1: global-avg-pool + channel conv + sigmoid -> attn (B, C, 1).
    T1 = _lane_tile(C, HW, itemsize, _P1_BUF_BYTES)       # only x is double-buffered
    n1 = pl.cdiv(HW, T1)
    tail1 = HW - (n1 - 1) * T1
    tail1 = 0 if tail1 == T1 else tail1                   # 0 => no ragged tail

    attn = pl.pallas_call(
        functools.partial(_pool_conv_kernel, C=C, HW=HW, K=K, tail=tail1),
        out_shape=jax.ShapeDtypeStruct((B, C, 1), jnp.float32),
        grid_spec=pltpu.PrefetchScalarGridSpec(
            num_scalar_prefetch=0,
            grid=(B, n1),
            in_specs=[
                pl.BlockSpec(memory_space=pltpu.MemorySpace.SMEM),            # weights
                pl.BlockSpec((pl.Squeezed(), C, T1), lambda b, t: (b, 0, t)),  # x tile
            ],
            out_specs=pl.BlockSpec((pl.Squeezed(), C, 1), lambda b, t: (b, 0, 0)),
        ),
        compiler_params=pltpu.CompilerParams(
            dimension_semantics=("parallel", "arbitrary"),
            vmem_limit_bytes=48 << 20),
        cost_estimate=pl.CostEstimate(
            flops=B * C * (HW + 2 * K),
            transcendentals=B * C,
            bytes_accessed=B * C * HW * itemsize + B * C * 4),
    )(conv_weight, x_flat)

    # Phase 2: lane-dense broadcast scale (memory bound, fully parallel).
    T2 = _lane_tile(C, HW, itemsize, _P2_BUF_BYTES)
    n2 = pl.cdiv(HW, T2)

    out_flat = pl.pallas_call(
        _scale_kernel,
        out_shape=jax.ShapeDtypeStruct((B, C, HW), x_nchw.dtype),
        grid_spec=pltpu.PrefetchScalarGridSpec(
            num_scalar_prefetch=0,
            grid=(B, n2),
            in_specs=[
                pl.BlockSpec((pl.Squeezed(), C, 1), lambda b, t: (b, 0, 0)),   # attn
                pl.BlockSpec((pl.Squeezed(), C, T2), lambda b, t: (b, 0, t)),  # x tile
            ],
            out_specs=pl.BlockSpec((pl.Squeezed(), C, T2), lambda b, t: (b, 0, t)),
        ),
        compiler_params=pltpu.CompilerParams(
            dimension_semantics=("parallel", "parallel"),
            vmem_limit_bytes=48 << 20),
        cost_estimate=pl.CostEstimate(
            flops=B * C * HW,
            transcendentals=0,
            bytes_accessed=2 * B * C * HW * itemsize + B * C * 4),
    )(attn, x_flat)

    return out_flat.reshape(B, C, H, W)


# --------------------------------------------------------------------------
# Pure-JAX reference
# --------------------------------------------------------------------------
def eca_reference(x, w):
    B, C, H, W = x.shape
    K = w.shape[0]
    pooled = jnp.mean(x.astype(jnp.float32), axis=(2, 3))            # (B, C)
    pad = K // 2
    padded = jnp.pad(pooled, ((0, 0), (pad, pad)))
    conv = sum(w[j] * padded[:, j:j + C] for j in range(K))
    attn = jax.nn.sigmoid(conv)
    return (x.astype(jnp.float32) * attn[:, :, None, None]).astype(x.dtype)


if __name__ == "__main__":
    key = jax.random.PRNGKey(0)

    # Test 1: fused single-pass path, lane-aligned spatial size (16*16 = 256).
    B, C, H, W = 2, 8, 16, 16
    K = eca_kernel_size(C)                 # = 3
    kx, kw, key = jax.random.split(key, 3)
    x = jax.random.normal(kx, (B, C, H, W), dtype=jnp.float32)
    conv_w = jax.random.normal(kw, (K,), dtype=jnp.float32) * 0.5
    out = jax.block_until_ready(eca_forward(x, conv_w))
    np.testing.assert_allclose(np.asarray(out), np.asarray(eca_reference(x, conv_w)),
                               rtol=1e-5, atol=1e-5)

    # Test 2: fused path with a non-128-multiple spatial size (12*12 = 144).
    B2, C2, H2, W2 = 1, 32, 12, 12
    K2 = eca_kernel_size(C2)               # = 3
    kx2, kw2, key = jax.random.split(key, 3)
    x2 = jax.random.normal(kx2, (B2, C2, H2, W2), dtype=jnp.float32)
    conv_w2 = jax.random.normal(kw2, (K2,), dtype=jnp.float32) * 0.5
    out2 = jax.block_until_ready(eca_forward(x2, conv_w2))
    np.testing.assert_allclose(np.asarray(out2), np.asarray(eca_reference(x2, conv_w2)),
                               rtol=1e-5, atol=1e-5)

    # Test 3: two-pass fallback (forced) with ragged HW tail (10*10 = 100),
    # exercises the in-kernel tail handling with NO HBM-side padding/slicing.
    B3, C3, H3, W3 = 2, 16, 10, 10
    K3 = eca_kernel_size(C3)               # = 3
    kx3, kw3 = jax.random.split(key)
    x3 = jax.random.normal(kx3, (B3, C3, H3, W3), dtype=jnp.float32)
    conv_w3 = jax.random.normal(kw3, (K3,), dtype=jnp.float32) * 0.5
    out3 = jax.block_until_ready(eca_forward(x3, conv_w3, force_two_pass=True))
    np.testing.assert_allclose(np.asarray(out3), np.asarray(eca_reference(x3, conv_w3)),
                               rtol=1e-5, atol=1e-5)

    print("KERNEL_OK")
</pallas_src>

<mosaic_0001>
module attributes {stable_mosaic.version = 11 : i64} {
  func.func @_fused_kernel(%arg0: i32, %arg1: memref<3xf32, #tpu.memory_space<smem>>, %arg2: memref<1x8x256xf32, #tpu.memory_space<vmem>>, %arg3: memref<1x8x256xf32, #tpu.memory_space<vmem>>) attributes {dimension_semantics = [#tpu.dimension_semantics<parallel>], iteration_bounds = array<i64: 2>, scalar_prefetch = 0 : i64, scratch_operands = 0 : i64, tpu.core_type = #tpu.core_type<tc>, window_params = [{transform_indices = @transform_0, window_bounds = array<i64: 3>}, {transform_indices = @transform_1, window_bounds = array<i64: 1, 8, 256>}, {transform_indices = @transform_2, window_bounds = array<i64: 1, 8, 256>}]} {
    %c0 = arith.constant 0 : index
    %c0_0 = arith.constant 0 : index
    %c0_1 = arith.constant 0 : index
    %0 = vector.load %arg2[%c0, %c0_0, %c0_1] : memref<1x8x256xf32, #tpu.memory_space<vmem>>, vector<1x8x256xf32>
    %1 = vector.shape_cast %0 : vector<1x8x256xf32> to vector<8x256xf32>
    %cst = arith.constant dense<0.000000e+00> : vector<8xf32>
    %2 = vector.multi_reduction <add>, %1, %cst [1] : vector<8x256xf32> to vector<8xf32>
    %3 = vector.shape_cast %2 : vector<8xf32> to vector<8x1xf32>
    %cst_2 = arith.constant 3.906250e-03 : f32
    %4 = vector.broadcast %cst_2 : f32 to vector<8x1xf32>
    %5 = arith.mulf %3, %4 : vector<8x1xf32>
    %6 = tpu.iota {dimensions = array<i32: 0>} : vector<8x1xi32>
    %cst_3 = arith.constant 0.000000e+00 : f32
    %7 = vector.broadcast %cst_3 : f32 to vector<8x1xf32>
    %c1_i32 = arith.constant 1 : i32
    %8 = tpu.dynamic_rotate %5 by %c1_i32 dim 0 : vector<8x1xf32>, i32 -> vector<8x1xf32>
    %c-1_i32 = arith.constant -1 : i32
    %9 = vector.broadcast %c-1_i32 : i32 to vector<8x1xi32>
    %10 = arith.addi %6, %9 : vector<8x1xi32>
    %c0_i32 = arith.constant 0 : i32
    %11 = vector.broadcast %c0_i32 : i32 to vector<8x1xi32>
    %12 = arith.cmpi sge, %10, %11 : vector<8x1xi32>
    %c8_i32 = arith.constant 8 : i32
    %13 = vector.broadcast %c8_i32 : i32 to vector<8x1xi32>
    %14 = arith.cmpi slt, %10, %13 : vector<8x1xi32>
    %15 = arith.andi %12, %14 : vector<8x1xi1>
    %c0_4 = arith.constant 0 : index
    %16 = memref.load %arg1[%c0_4] : memref<3xf32, #tpu.memory_space<smem>>
    %cst_5 = arith.constant 0.000000e+00 : f32
    %17 = vector.broadcast %cst_5 : f32 to vector<8x1xf32>
    %18 = arith.select %15, %8, %17 : vector<8x1xi1>, vector<8x1xf32>
    %19 = vector.broadcast %16 : f32 to vector<8x1xf32>
    %20 = arith.mulf %19, %18 : vector<8x1xf32>
    %21 = arith.addf %7, %20 : vector<8x1xf32>
    %c0_i32_6 = arith.constant 0 : i32
    %22 = vector.broadcast %c0_i32_6 : i32 to vector<8x1xi32>
    %23 = arith.addi %6, %22 : vector<8x1xi32>
    %c0_i32_7 = arith.constant 0 : i32
    %24 = vector.broadcast %c0_i32_7 : i32 to vector<8x1xi32>
    %25 = arith.cmpi sge, %23, %24 : vector<8x1xi32>
    %c8_i32_8 = arith.constant 8 : i32
    %26 = vector.broadcast %c8_i32_8 : i32 to vector<8x1xi32>
    %27 = arith.cmpi slt, %23, %26 : vector<8x1xi32>
    %28 = arith.andi %25, %27 : vector<8x1xi1>
    %c1 = arith.constant 1 : index
    %29 = memref.load %arg1[%c1] : memref<3xf32, #tpu.memory_space<smem>>
    %cst_9 = arith.constant 0.000000e+00 : f32
    %30 = vector.broadcast %cst_9 : f32 to vector<8x1xf32>
    %31 = arith.select %28, %5, %30 : vector<8x1xi1>, vector<8x1xf32>
    %32 = vector.broadcast %29 : f32 to vector<8x1xf32>
    %33 = arith.mulf %32, %31 : vector<8x1xf32>
    %34 = arith.addf %21, %33 : vector<8x1xf32>
    %c7_i32 = arith.constant 7 : i32
    %35 = tpu.dynamic_rotate %5 by %c7_i32 dim 0 : vector<8x1xf32>, i32 -> vector<8x1xf32>
    %c1_i32_10 = arith.constant 1 : i32
    %36 = vector.broadcast %c1_i32_10 : i32 to vector<8x1xi32>
    %37 = arith.addi %6, %36 : vector<8x1xi32>
    %c0_i32_11 = arith.constant 0 : i32
    %38 = vector.broadcast %c0_i32_11 : i32 to vector<8x1xi32>
    %39 = arith.cmpi sge, %37, %38 : vector<8x1xi32>
    %c8_i32_12 = arith.constant 8 : i32
    %40 = vector.broadcast %c8_i32_12 : i32 to vector<8x1xi32>
    %41 = arith.cmpi slt, %37, %40 : vector<8x1xi32>
    %42 = arith.andi %39, %41 : vector<8x1xi1>
    %c2 = arith.constant 2 : index
    %43 = memref.load %arg1[%c2] : memref<3xf32, #tpu.memory_space<smem>>
    %cst_13 = arith.constant 0.000000e+00 : f32
    %44 = vector.broadcast %cst_13 : f32 to vector<8x1xf32>
    %45 = arith.select %42, %35, %44 : vector<8x1xi1>, vector<8x1xf32>
    %46 = vector.broadcast %43 : f32 to vector<8x1xf32>
    %47 = arith.mulf %46, %45 : vector<8x1xf32>
    %48 = arith.addf %34, %47 : vector<8x1xf32>
    %49 = arith.negf %48 : vector<8x1xf32>
    %50 = math.exp %49 : vector<8x1xf32>
    %cst_14 = arith.constant 1.000000e+00 : f32
    %51 = vector.broadcast %cst_14 : f32 to vector<8x1xf32>
    %52 = arith.addf %51, %50 : vector<8x1xf32>
    %53 = arith.divf %51, %52 : vector<8x1xf32>
    %54 = vector.broadcast %53 : vector<8x1xf32> to vector<8x256xf32>
    %55 = arith.mulf %1, %54 : vector<8x256xf32>
    %c0_15 = arith.constant 0 : index
    %c0_16 = arith.constant 0 : index
    %c0_17 = arith.constant 0 : index
    %56 = vector.load %arg3[%c0_15, %c0_16, %c0_17] : memref<1x8x256xf32, #tpu.memory_space<vmem>>, vector<1x8x256xf32>
    %57 = vector.shape_cast %56 : vector<1x8x256xf32> to vector<8x256xf32>
    %58 = vector.shape_cast %55 : vector<8x256xf32> to vector<1x8x256xf32>
    tpu.vector_store %arg3[%c0_15, %c0_16, %c0_17], %58 {strides = array<i32>} : memref<1x8x256xf32, #tpu.memory_space<vmem>>, vector<1x8x256xf32>,
    return
  }
  func.func @transform_0(%arg0: i32) -> i32 {
    %c0_i32 = arith.constant 0 : i32
    %c0_i32_0 = arith.constant 0 : i32
    return %c0_i32 : i32
  }
  func.func @transform_1(%arg0: i32) -> (i32, i32, i32) {
    %c0_i32 = arith.constant 0 : i32
    %c0_i32_0 = arith.constant 0 : i32
    %c0_i32_1 = arith.constant 0 : i32
    return %arg0, %c0_i32, %c0_i32_0 : i32, i32, i32
  }
  func.func @transform_2(%arg0: i32) -> (i32, i32, i32) {
    %c0_i32 = arith.constant 0 : i32
    %c0_i32_0 = arith.constant 0 : i32
    %c0_i32_1 = arith.constant 0 : i32
    return %arg0, %c0_i32, %c0_i32_0 : i32, i32, i32
  }
}

</mosaic_0001>

<llo_original>
// kernel: tpu_custom_call.1
$region0: #{tpu_custom_call.1}
  #allocation0 [shape = 'u32[]', space=smem, size = 0x4, offset = 0x4, fixed_abs, tag = 'smem constant byte address 0x4 - core index']
  #allocation1 [shape = 'u32[144,128]{1,0:T(1,128)}', space=vmem, size = 0x12000, scoped, tag = 'internal scratch']
  %s0 = inlined_call_operand.hbm [shape: f32[3], index: 0, kind: input, shape index: {}]
  %s1 = inlined_call_operand.hbm [shape: f32[2,8,256], index: 1, kind: input, shape index: {}]
  %s2 = inlined_call_operand.hbm [shape: f32[2,8,256], index: 2, kind: output, shape index: {}]
  %s3 = sld [smem:[#allocation0]]
  $region49: #{tpu_custom_call.1} parent=0
    _
  %s5 = ssub.s32 1, %s3
  %s6 = scalar_select 0, %s5, %s3
  $region1: #{tpu_custom_call.1} parent=0
    #allocation2 [shape = 'u8[512]{0}', space=smem, size = 0x200, scoped, tag = 'input window, operand 0, single buffered']
    #allocation3 [shape = 's32[2]{0}', space=sflag, size = 0x8, scoped, tag = 'scoped memory for tpu_custom_call.1']
    #allocation4 [shape = 's32[2]{0}', space=sflag, size = 0x8, scoped, tag = 'scoped memory for tpu_custom_call.1']
    #allocation5 [shape = 's32[2]{0}', space=sflag, size = 0x8, scoped, tag = 'scoped memory for tpu_custom_call.1']
    #allocation6 [shape = 'u8[16384]{0}', space=vmem, size = 0x4000, scoped, tag = 'input window, operand 1']
    #allocation7 [shape = 'u8[16384]{0}', space=vmem, size = 0x4000, scoped, tag = 'output window, operand 0']
    %7 = vsyncpa [#allocation5], 0
    %8 = vsyncpa [#allocation3], 0
    %s9 = scalar_lea.sflag [#allocation3], 1
    %10 = vsyncpa %s9, 0
    %11 = vsyncpa [#allocation4], 0
    %s12 = scalar_lea.sflag [#allocation4], 1
    %13 = vsyncpa %s12, 0
    loop: start=0, step=1, limit=4
    $region2: #{tpu_custom_call.1} parent=1 // loop_pre_header
      _
    $region3: #{tpu_custom_call.1} parent=1 // loop_header
      %s15 = sphi 0, %s19
      %p16 = scmp.ge.s32.totalorder %s15, 4
      %s23 = sphi 0, %s23
      %s25 = sphi 0, %s23
      %s26 = sphi 0, %s25
      %s40 = sphi 0, %s26
      %s46 = sphi 0, %s48
      %s49 = sphi 0, %s46
      %s50 = sphi 0, %s49
      %s66 = sphi 0, %s50
      %s72 = sphi 0, %s74
      %s75 = sphi 0, %s72
      %s76 = sphi 0, %s75
      %s92 = sphi 0, %s76
    $region4: #{tpu_custom_call.1} parent=1 // loop_header_branch
      %18 = sbr.rel (%p16) target = $region8
    $region5: #{tpu_custom_call.1} parent=1 // loop_body
      %s20 = ssub.s32 %s15, 1
      %s21 = ssub.s32 %s15, 2
      %s22 = sadd.s32 %s15, 1
      %s24 = sadd.s32 %s23, 1
      %p27 = scmp.eq.s32.totalorder %s15, 1
      %p28 = scmp.ne.s32.totalorder %s23, %s25
      %p29 = scmp.eq.s32.totalorder %s15, 0
      %p30 = por %p28, %p29
      %p31 = scmp.ne.s32.totalorder %s23, %s25
      %p32 = scmp.eq.s32.totalorder %s20, 1
      %p33 = por %p31, %p32
      %p34 = scmp.ne.s32.totalorder %s25, %s26
      %p35 = scmp.eq.s32.totalorder %s20, 0
      %p36 = por %p34, %p35
      %p37 = scmp.ne.s32.totalorder %s25, %s26
      %p38 = scmp.eq.s32.totalorder %s21, 1
      %p39 = por %p37, %p38
      %p41 = scmp.ne.s32.totalorder %s26, %s40
      %p42 = scmp.eq.s32.totalorder %s21, 0
      %p43 = por %p41, %p42
      %s44 = ssub.s32 %s15, %s22
      %p45 = scmp.eq.s32.totalorder %s44, 0
      %s47 = sadd.s32 %s46, 1
      %s48 = scalar_select %p45, %s46, %s47
      %p51 = pneg %p45
      %p52 = scmp.eq.s32.totalorder %s15, 1
      %p53 = por %p51, %p52
      %p54 = scmp.ne.s32.totalorder %s46, %s49
      %p55 = scmp.eq.s32.totalorder %s15, 0
      %p56 = por %p54, %p55
      %p57 = scmp.ne.s32.totalorder %s46, %s49
      %p58 = scmp.eq.s32.totalorder %s20, 1
      %p59 = por %p57, %p58
      %p60 = scmp.ne.s32.totalorder %s49, %s50
      %p61 = scmp.eq.s32.totalorder %s20, 0
      %p62 = por %p60, %p61
      %p63 = scmp.ne.s32.totalorder %s49, %s50
      %p64 = scmp.eq.s32.totalorder %s21, 1
      %p65 = por %p63, %p64
      %p67 = scmp.ne.s32.totalorder %s50, %s66
      %p68 = scmp.eq.s32.totalorder %s21, 0
      %p69 = por %p67, %p68
      %s70 = ssub.s32 %s15, %s22
      %p71 = scmp.eq.s32.totalorder %s70, 0
      %s73 = sadd.s32 %s72, 1
      %s74 = scalar_select %p71, %s72, %s73
      %p77 = pneg %p71
      %p78 = scmp.eq.s32.totalorder %s15, 1
      %p79 = por %p77, %p78
      %p80 = scmp.ne.s32.totalorder %s72, %s75
      %p81 = scmp.eq.s32.totalorder %s15, 0
      %p82 = por %p80, %p81
      %p83 = scmp.ne.s32.totalorder %s72, %s75
      %p84 = scmp.eq.s32.totalorder %s20, 1
      %p85 = por %p83, %p84
      %p86 = scmp.ne.s32.totalorder %s75, %s76
      %p87 = scmp.eq.s32.totalorder %s20, 0
      %p88 = por %p86, %p87
      %p89 = scmp.ne.s32.totalorder %s75, %s76
      %p90 = scmp.eq.s32.totalorder %s21, 1
      %p91 = por %p89, %p90
      %p93 = scmp.ne.s32.totalorder %s76, %s92
      %p94 = scmp.eq.s32.totalorder %s21, 0
      %p95 = por %p93, %p94
      %p96 = scmp.le.s32.totalorder 1, %s15
      %p97 = scmp.lt.s32.totalorder %s15, 3
      %p98 = pnand %p96, %p97
      %p99 = pneg %p98
      // Predicated region
      $region9: #{tpu_custom_call.1} parent=5 // pred_check
        _
      $region10: #{tpu_custom_call.1} parent=5 // pred_check_branch
        %101 = sbr.rel (%p98) target = $region12
      $region11: #{tpu_custom_call.1} parent=5 // pred_region
        %s102 = ssub.s32 %s15, 1
        // Predicated region
        $region13: #{tpu_custom_call.1} parent=11 // pred_check
          %p103 = pneg %p36
        $region14: #{tpu_custom_call.1} parent=11 // pred_check_branch
          %105 = sbr.rel (%p103) target = $region16
        $region15: #{tpu_custom_call.1} parent=11 // pred_region
          %s107 = ssub.s32 16, 16
          %108 = vsyncadd [#allocation5], %s107
          %111 = dma.hbm_to_smem %s0, 16, [#allocation2], [#allocation5]
        $region16: #{tpu_custom_call.1} parent=11 // pred_fallthru
          _
      $region12: #{tpu_custom_call.1} parent=5 // pred_fallthru
        _
      %p112 = scmp.lt.s32.totalorder %s15, 2
      // Predicated region
      $region17: #{tpu_custom_call.1} parent=5 // pred_check
        %p113 = pneg %p112
      $region18: #{tpu_custom_call.1} parent=5 // pred_check_branch
        %115 = sbr.rel (%p113) target = $region20
      $region19: #{tpu_custom_call.1} parent=5 // pred_region
        // Predicated region
        $region21: #{tpu_custom_call.1} parent=19 // pred_check
          %p116 = pneg %p56
        $region22: #{tpu_custom_call.1} parent=19 // pred_check_branch
          %118 = sbr.rel (%p116) target = $region24
        $region23: #{tpu_custom_call.1} parent=19 // pred_region
          %s119 = sand.u32 %s46, 1
          %s120 = scalar_lea.sflag [#allocation3], %s119
          %s121 = sand.u32 %s46, 1
          %s122 = smul.addr %s121, 16
          %s123 = scalar_lea.vmem [#allocation6], %s122
          %s125 = ssub.s32 256, 256
          %126 = vsyncadd %s120, %s125
          %s127 = smul.addr %s15, 2
          %s128 = smul.addr %s127, 128
          %s129 = scalar_lea.hbm %s1, %s128
          %s131 = sshll.u32 %s123, 4
          %s132 = int_to_ptr.vmem [resolvable:$true] %s131
          %134 = dma.hbm_to_vmem [thread:$0]  %s129, 256, %s132, %s120
        $region24: #{tpu_custom_call.1} parent=19 // pred_fallthru
          _
      $region20: #{tpu_custom_call.1} parent=5 // pred_fallthru
        _
      %p135 = scmp.le.s32.totalorder 1, %s15
      %p136 = scmp.lt.s32.totalorder %s15, 3
      %p137 = pnand %p135, %p136
      %p138 = pneg %p137
      // Predicated region
      $region25: #{tpu_custom_call.1} parent=5 // pred_check
        _
      $region26: #{tpu_custom_call.1} parent=5 // pred_check_branch
        %140 = sbr.rel (%p137) target = $region28
      $region27: #{tpu_custom_call.1} parent=5 // pred_region
        %s141 = ssub.s32 %s15, 1
        // Predicated region
        $region29: #{tpu_custom_call.1} parent=27 // pred_check
          %p142 = pneg %p36
        $region30: #{tpu_custom_call.1} parent=27 // pred_check_branch
          %144 = sbr.rel (%p142) target = $region32
        $region31: #{tpu_custom_call.1} parent=27 // pred_region
          %145 = dma.done [#allocation5], 16
        $region32: #{tpu_custom_call.1} parent=27 // pred_fallthru
          _
        %s146 = sand.u32 %s49, 1
        %s147 = scalar_lea.sflag [#allocation3], %s146
        %s148 = sand.u32 %s49, 1
        %s149 = smul.addr %s148, 16
        %s150 = scalar_lea.vmem [#allocation6], %s149
        // Predicated region
        $region33: #{tpu_custom_call.1} parent=27 // pred_check
          %p151 = pneg %p62
        $region34: #{tpu_custom_call.1} parent=27 // pred_check_branch
          %153 = sbr.rel (%p151) target = $region36
        $region35: #{tpu_custom_call.1} parent=27 // pred_region
          %154 = dma.done %s147, 256
        $region36: #{tpu_custom_call.1} parent=27 // pred_fallthru
          _
        %155 = sfence
        %p156 = pneg %p36
        %p157 = pneg %p33
        %s158 = sand.u32 %s49, 1
        %s159 = scalar_lea.sflag [#allocation3], %s158
        %s160 = sand.u32 %s49, 1
        %s161 = smul.addr %s160, 16
        %s162 = scalar_lea.vmem [#allocation6], %s161
        %p163 = pneg %p62
        %p164 = pneg %p59
        %p165 = pneg %p88
        %p166 = pneg %p85
        %s167 = sand.u32 %s75, 1
        %s168 = scalar_lea.sflag [#allocation4], %s167
        %s169 = sand.u32 %s75, 1
        %s170 = smul.addr %s169, 16
        %s171 = scalar_lea.vmem [#allocation7], %s170
        %v172 = vld [vmem:[%s150] sm:$0xff]
        %v173 = vld [vmem:[%s150 + $0x8] sm:$0xff]
        %v174 = vadd.f32 %v172, %v173
        %175 = vadd.xlane.f32.xlu0 %v174
        %v176 = vpop.xlane.xlu0 %175
        %v177 = vmul.f32 %v176, 0.00390625
        %v178 = vlaneseq
        %v179 = vshrl.u32 %v178, 7
        %v180 = vrot.slane %v177, 7
        %v181 = vadd.s32 %v179, 4294967295
        %vm182 = vcmp.ge.s32.totalorder %v181, 0
        %vm183 = vcmp.lt.s32.totalorder %v181, 8
        %vm184 = vmand %vm182, %vm183
        %s185 = sld [smem:[#allocation2]]
        %v186 = vsel %vm184, %v180, 0.0
        %v187 = vstv %s185
        %v188 = vmul.f32 %v187, %v186
        %v189 = vadd.f32 %v188, 0.0
        %vm190 = vcmp.ge.s32.totalorder %v179, 0
        %vm191 = vcmp.lt.s32.totalorder %v179, 8
        %vm192 = vmand %vm190, %vm191
        %s193 = sld [smem:[#allocation2 + $0x1]]
        %v194 = vsel %vm192, %v177, 0.0
        %v195 = vstv %s193
        %v196 = vmul.f32 %v195, %v194
        %v197 = vadd.f32 %v189, %v196
        %v198 = vrot.slane %v177, 1
        %v199 = vadd.s32 %v179, 1
        %vm200 = vcmp.ge.s32.totalorder %v199, 0
        %vm201 = vcmp.lt.s32.totalorder %v199, 8
        %vm202 = vmand %vm200, %vm201
        %s203 = sld [smem:[#allocation2 + $0x2]]
        %v204 = vsel %vm202, %v198, 0.0
        %v205 = vstv %s203
        %v206 = vmul.f32 %v205, %v204
        %v207 = vadd.f32 %v197, %v206
        %v208 = vxor.u32 %v207, 2147483648
        %v209 = vmul.f32 %v208, 1.442695
        %v210 = vpow.pop %v209
        %v211 = vadd.f32 %v210, 1.0
        %v212 = vrcp.pop %v211
        %v213 = vmul.f32 1.0, %v212
        %215 = vset.pattern.permute.xlu0 0
        %216 = vperm.xlu0 %215, %v213
        %v217 = vpop.permute.xlu0 %216
        %v219 = vmul.f32 %v172, %v217
        %v220 = vmul.f32 %v173, %v217
        %221 = vst [vmem:[%s171] sm:$0xff] %v219
        %222 = vst [vmem:[%s171 + $0x8] sm:$0xff] %v220
        %s223 = sand.u32 %s75, 1
        %s224 = scalar_lea.sflag [#allocation4], %s223
        %s225 = sand.u32 %s75, 1
        %s226 = smul.addr %s225, 16
        %s227 = scalar_lea.vmem [#allocation7], %s226
        // Predicated region
        $region37: #{tpu_custom_call.1} parent=27 // pred_check
          %p228 = pneg %p85
        $region38: #{tpu_custom_call.1} parent=27 // pred_check_branch
          %230 = sbr.rel (%p228) target = $region40
        $region39: #{tpu_custom_call.1} parent=27 // pred_region
          %s232 = ssub.s32 256, 256
          %233 = vsyncadd %s224, %s232
          %s234 = smul.addr %s20, 2
          %s235 = smul.addr %s234, 128
          %s236 = scalar_lea.hbm %s2, %s235
          %s238 = sshll.u32 %s227, 4
          %s239 = int_to_ptr.vmem [resolvable:$true] %s238
          %241 = dma.vmem_to_hbm [thread:$0]  %s239, 256, %s236, %s224
        $region40: #{tpu_custom_call.1} parent=27 // pred_fallthru
          _
      $region28: #{tpu_custom_call.1} parent=5 // pred_fallthru
        _
      %p242 = scmp.le.s32.totalorder 2, %s15
      // Predicated region
      $region41: #{tpu_custom_call.1} parent=5 // pred_check
        %p243 = pneg %p242
      $region42: #{tpu_custom_call.1} parent=5 // pred_check_branch
        %245 = sbr.rel (%p243) target = $region44
      $region43: #{tpu_custom_call.1} parent=5 // pred_region
        %s246 = ssub.s32 %s15, 2
        // Predicated region
        $region45: #{tpu_custom_call.1} parent=43 // pred_check
          %p247 = pneg %p91
        $region46: #{tpu_custom_call.1} parent=43 // pred_check_branch
          %249 = sbr.rel (%p247) target = $region48
        $region47: #{tpu_custom_call.1} parent=43 // pred_region
          %s250 = sand.u32 %s76, 1
          %s251 = scalar_lea.sflag [#allocation4], %s250
          %s252 = sand.u32 %s76, 1
          %s253 = smul.addr %s252, 16
          %s254 = scalar_lea.vmem [#allocation7], %s253
          %255 = dma.done %s251, 256
        $region48: #{tpu_custom_call.1} parent=43 // pred_fallthru
          _
      $region44: #{tpu_custom_call.1} parent=5 // pred_fallthru
        _
    $region6: #{tpu_custom_call.1} parent=1 // loop_footer
      %s19 = sadd.s32 1, %s15
    $region7: #{tpu_custom_call.1} parent=1 // loop_footer_branch
      %14 = sbr.rel target = $region3
    $region8: #{tpu_custom_call.1} parent=1 // loop_exit
      _
    %256 = vsyncpa [#allocation3], 1
    %s257 = scalar_lea.sflag [#allocation3], 1
    %258 = vsyncpa %s257, 1
    %259 = vsyncpa [#allocation4], 1
    %s260 = scalar_lea.sflag [#allocation4], 1
    %261 = vsyncpa %s260, 1
    %262 = vsyncpa [#allocation5], 1
    %s263 = scalar_lea.sflag [#allocation5], 1
    %264 = vsyncpa %s263, 1

</llo_original>
